<compile_context>
chip_gen: v6e
topology: v6e:2x2x1
jax: 0.10.0
libtpu: 0.0.40
codegen_flags: <defaults>
</compile_context>

<pallas_src>
import functools

import jax
import jax.numpy as jnp
from jax import lax
from jax.experimental import pallas as pl
from jax.experimental.pallas import tpu as pltpu

EPS = 1e-5
LANE = 128


# ----------------------------------------------------------------------------
# VMEM budgeting helpers
# ----------------------------------------------------------------------------
def _round_up(v, m):
    return ((v + m - 1) // m) * m


def _vmem_limit_bytes():
    """Scoped-VMEM limit derived from the actual chip (85% of capacity)."""
    try:
        cap = int(pltpu.get_tpu_info().vmem_capacity_bytes)
    except Exception:
        cap = 64 * 1024 * 1024  # conservative default (v7x physical VMEM)
    return int(cap * 0.85)


def _per_elem_bytes(itemsize):
    # 2x double-buffered input + 2x double-buffered output + f32 temporaries;
    # sub-f32 dtypes additionally materialize a widened f32 copy + f32 result
    # before the narrowing cast.
    return 4 * itemsize + (8 if itemsize >= 4 else 12)


def _choose_feature_tile(Dp, N, itemsize, budget, *, min_tiles=4, max_td=512):
    """Largest lane-dense TD dividing Dp that fits the budget while keeping
    at least `min_tiles` grid steps (pipelining / megacore sharding).

    Returns (TD, fits): `fits` says whether a full-N column tile of width TD
    stays within the VMEM budget."""
    per_elem = _per_elem_bytes(itemsize)
    cands = [td for td in range(LANE, Dp + 1, LANE) if Dp % td == 0]
    fitting = [td for td in cands if N * td * per_elem <= budget]
    if not fitting:
        return LANE, False
    capped = [td for td in fitting if td <= max_td] or fitting

    def score(td):
        # prefer more tiles (up to min_tiles), then the bigger TD
        return (min(Dp // td, min_tiles), td)

    return max(capped, key=score), True


def _two_sweep_tiles(N, Dp, itemsize, budget):
    """Tile sizes for the two-pass (large-N) fallback."""
    per_elem = _per_elem_bytes(itemsize)
    cands = [t for t in range(LANE, min(Dp, 512) + 1, LANE) if Dp % t == 0]
    td = max(cands) if cands else LANE
    nt_cap = max(8, (budget // (td * per_elem) // 8) * 8)
    nt = min(int(nt_cap), _round_up(N, 8))
    return int(nt), int(td)


# ----------------------------------------------------------------------------
# Kernels
# ----------------------------------------------------------------------------
def _bn_single_sweep_kernel(x_ref, gamma_ref, beta_ref, o_ref, *, n_rows):
    """One (N, TD) column tile per grid step: stats + fused affine normalize."""
    x = x_ref[...].astype(jnp.float32)                      # (N, TD)
    inv_n = jnp.float32(1.0 / n_rows)

    s = jnp.sum(x, axis=0, keepdims=True)                   # (1, TD)
    ss = jnp.sum(x * x, axis=0, keepdims=True)              # (1, TD)
    mean = s * inv_n
    # single-pass variance; clamp >= 0 against catastrophic cancellation
    var = jnp.maximum(ss * inv_n - mean * mean, 0.0)
    inv_std = lax.rsqrt(var + EPS)                          # EUP slot (free)

    scale = gamma_ref[...] * inv_std                        # (1, TD)
    bias = beta_ref[...] - mean * scale                     # (1, TD)
    o_ref[...] = (x * scale + bias).astype(o_ref.dtype)     # 1 mul + 1 add / elem


def _bn_stats_kernel(x_ref, gamma_ref, beta_ref, scale_ref, bias_ref,
                     sum_ref, sumsq_ref, *, n_rows):
    """Fallback pass 1: per-feature fused (scale, bias) over N tiles.

    Grid = (D_tiles, N_tiles). Accumulate sum / sumsq into (1, TD) VMEM
    scratch; on the last N tile emit scale = gamma*inv_std and
    bias = beta - mean*scale. Zero-padded rows add nothing to the sums;
    statistics divide by the true row count."""
    n_idx = pl.program_id(1)

    @pl.when(n_idx == 0)
    def _():
        sum_ref[...] = jnp.zeros_like(sum_ref)
        sumsq_ref[...] = jnp.zeros_like(sumsq_ref)

    x = x_ref[...].astype(jnp.float32)                      # (NT, TD)
    sum_ref[...] = sum_ref[...] + jnp.sum(x, axis=0, keepdims=True)
    sumsq_ref[...] = sumsq_ref[...] + jnp.sum(x * x, axis=0, keepdims=True)

    @pl.when(n_idx == pl.num_programs(1) - 1)
    def _():
        inv_n = jnp.float32(1.0 / n_rows)
        mean = sum_ref[...] * inv_n
        var = jnp.maximum(sumsq_ref[...] * inv_n - mean * mean, 0.0)
        inv_std = lax.rsqrt(var + EPS)
        scale = gamma_ref[...] * inv_std
        scale_ref[...] = scale
        bias_ref[...] = beta_ref[...] - mean * scale


def _bn_apply_kernel(x_ref, scale_ref, bias_ref, o_ref):
    """Fallback pass 2: purely elementwise y = x*scale + bias."""
    x = x_ref[...].astype(jnp.float32)
    o_ref[...] = (x * scale_ref[...] + bias_ref[...]).astype(o_ref.dtype)


# ----------------------------------------------------------------------------
# pallas_call wrappers
# ----------------------------------------------------------------------------
def _batchnorm_single_sweep(x2d, g2d, b2d, td, vmem_limit):
    N, Dp = x2d.shape
    itemsize = x2d.dtype.itemsize
    return pl.pallas_call(
        functools.partial(_bn_single_sweep_kernel, n_rows=float(N)),
        out_shape=jax.ShapeDtypeStruct((N, Dp), x2d.dtype),
        grid_spec=pltpu.PrefetchScalarGridSpec(
            num_scalar_prefetch=0,
            grid=(Dp // td,),
            in_specs=[
                pl.BlockSpec((N, td), lambda j: (0, j)),
                pl.BlockSpec((1, td), lambda j: (0, j)),
                pl.BlockSpec((1, td), lambda j: (0, j)),
            ],
            out_specs=pl.BlockSpec((N, td), lambda j: (0, j)),
        ),
        compiler_params=pltpu.CompilerParams(
            dimension_semantics=("parallel",),   # shardable across TCs on v7x
            vmem_limit_bytes=vmem_limit,
        ),
        cost_estimate=pl.CostEstimate(
            flops=5 * N * Dp,
            transcendentals=Dp,
            bytes_accessed=(2 * N * Dp + 3 * Dp) * itemsize,
        ),
    )(x2d, g2d, b2d)


def _batchnorm_two_sweep(x2d, g2d, b2d, n_true, vmem_limit, budget):
    N, Dp = x2d.shape
    itemsize = x2d.dtype.itemsize
    nt, td = _two_sweep_tiles(N, Dp, itemsize, budget)
    n_pad = (-N) % nt
    if n_pad:
        # zero padding is exact: pads add 0 to sum / sumsq, stats use n_true
        x2d = jnp.pad(x2d, ((0, n_pad), (0, 0)))
    Np = N + n_pad

    # --- Pass 1: per-feature fused scale / bias -------------------------------
    scale, bias = pl.pallas_call(
        functools.partial(_bn_stats_kernel, n_rows=float(n_true)),
        out_shape=(jax.ShapeDtypeStruct((1, Dp), jnp.float32),
                   jax.ShapeDtypeStruct((1, Dp), jnp.float32)),
        grid_spec=pltpu.PrefetchScalarGridSpec(
            num_scalar_prefetch=0,
            grid=(Dp // td, Np // nt),
            in_specs=[
                pl.BlockSpec((nt, td), lambda j, n: (n, j)),
                pl.BlockSpec((1, td), lambda j, n: (0, j)),
                pl.BlockSpec((1, td), lambda j, n: (0, j)),
            ],
            out_specs=(pl.BlockSpec((1, td), lambda j, n: (0, j)),
                       pl.BlockSpec((1, td), lambda j, n: (0, j))),
            scratch_shapes=[
                pltpu.VMEM((1, td), jnp.float32),   # running sum
                pltpu.VMEM((1, td), jnp.float32),   # running sum of squares
            ],
        ),
        compiler_params=pltpu.CompilerParams(
            dimension_semantics=("parallel", "arbitrary"),
            vmem_limit_bytes=vmem_limit,
        ),
        cost_estimate=pl.CostEstimate(
            flops=3 * Np * Dp,
            transcendentals=Dp,
            bytes_accessed=Np * Dp * itemsize + 6 * Dp * 4,
        ),
    )(x2d, g2d, b2d)

    # --- Pass 2: fused elementwise normalize ----------------------------------
    out2d = pl.pallas_call(
        _bn_apply_kernel,
        out_shape=jax.ShapeDtypeStruct((Np, Dp), x2d.dtype),
        grid_spec=pltpu.PrefetchScalarGridSpec(
            num_scalar_prefetch=0,
            grid=(Dp // td, Np // nt),
            in_specs=[
                pl.BlockSpec((nt, td), lambda j, n: (n, j)),
                pl.BlockSpec((1, td), lambda j, n: (0, j)),
                pl.BlockSpec((1, td), lambda j, n: (0, j)),
            ],
            out_specs=pl.BlockSpec((nt, td), lambda j, n: (n, j)),
        ),
        compiler_params=pltpu.CompilerParams(
            dimension_semantics=("parallel", "parallel"),
            vmem_limit_bytes=vmem_limit,
        ),
        cost_estimate=pl.CostEstimate(
            flops=2 * Np * Dp,
            transcendentals=0,
            bytes_accessed=2 * Np * Dp * itemsize + 2 * Dp * 4,
        ),
    )(x2d, scale, bias)
    return out2d[:n_true] if n_pad else out2d


def batchnorm_seq(x, gamma, beta, *, force_two_sweep=False):
    """x: (B, S, D). gamma/beta: (D,). Returns (B, S, D) — BatchNormSeq forward."""
    B, S, D = x.shape
    N = B * S
    x2d = x.reshape(N, D)
    g2d = gamma.reshape(1, D).astype(jnp.float32)
    b2d = beta.reshape(1, D).astype(jnp.float32)

    # Lane-dense padding of the feature axis (unmasked vst, no ragged lanes).
    Dp = _round_up(D, LANE)
    d_pad = Dp - D
    if d_pad:
        x2d = jnp.pad(x2d, ((0, 0), (0, d_pad)))
        g2d = jnp.pad(g2d, ((0, 0), (0, d_pad)), constant_values=1.0)
        b2d = jnp.pad(b2d, ((0, 0), (0, d_pad)))

    vmem_limit = _vmem_limit_bytes()
    budget = int(vmem_limit * 0.9)

    td, fits = _choose_feature_tile(Dp, N, x.dtype.itemsize, budget)
    if fits and not force_two_sweep:
        out2d = _batchnorm_single_sweep(x2d, g2d, b2d, td, vmem_limit)
    else:
        out2d = _batchnorm_two_sweep(x2d, g2d, b2d, N, vmem_limit, budget)
    if d_pad:
        out2d = out2d[:, :D]
    return out2d.reshape(B, S, D)


# ----------------------------------------------------------------------------
# Pure-JAX reference (matches PyTorch training-mode BatchNorm1d forward)
# ----------------------------------------------------------------------------
def batchnorm_seq_ref(x, gamma, beta):
    B, S, D = x.shape
    x2d = x.reshape(B * S, D).astype(jnp.float32)
    mean = jnp.mean(x2d, axis=0, keepdims=True)
    var = jnp.mean((x2d - mean) ** 2, axis=0, keepdims=True)  # biased variance
    y = (x2d - mean) / jnp.sqrt(var + EPS) * gamma[None, :] + beta[None, :]
    return y.reshape(B, S, D).astype(x.dtype)


if __name__ == "__main__":
    key = jax.random.PRNGKey(0)
    kx, kg, kb, kx2 = jax.random.split(key, 4)

    def _check(out, x, gamma, beta, tag):
        ref = batchnorm_seq_ref(x, gamma, beta)
        assert out.shape == x.shape, tag
        assert jnp.allclose(out, ref, atol=1e-4, rtol=1e-4), f"mismatch: {tag}"

    # --- Case 1: module-like small shape (B=2, S=8, D=32), lane-padded to 128,
    #             single-sweep path.
    B, S, D = 2, 8, 32
    x = jax.random.normal(kx, (B, S, D), dtype=jnp.float32)
    gamma = 1.0 + 0.1 * jax.random.normal(kg, (D,), dtype=jnp.float32)
    beta = 0.1 * jax.random.normal(kb, (D,), dtype=jnp.float32)

    out = jax.block_until_ready(batchnorm_seq(x, gamma, beta))
    _check(out, x, gamma, beta, "single_sweep_padded_D")

    # --- Case 2: lane-dense shape with multiple feature tiles (D=256 -> TD=128).
    B2, S2, D2 = 4, 32, 256
    x2 = jax.random.normal(kx2, (B2, S2, D2), dtype=jnp.float32)
    gamma2 = jnp.linspace(0.5, 1.5, D2, dtype=jnp.float32)
    beta2 = jnp.linspace(-0.25, 0.25, D2, dtype=jnp.float32)

    out2 = jax.block_until_ready(batchnorm_seq(x2, gamma2, beta2))
    _check(out2, x2, gamma2, beta2, "single_sweep_tiled_D")

    # --- Case 3: large-N two-pass fallback path (forced on small shapes).
    out3 = jax.block_until_ready(
        batchnorm_seq(x, gamma, beta, force_two_sweep=True))
    _check(out3, x, gamma, beta, "two_sweep_padded_D")

    out4 = jax.block_until_ready(
        batchnorm_seq(x2, gamma2, beta2, force_two_sweep=True))
    _check(out4, x2, gamma2, beta2, "two_sweep_tiled_D")

    print("KERNEL_OK")
</pallas_src>

<mosaic_0001>
module attributes {stable_mosaic.version = 11 : i64} {
  func.func @_bn_single_sweep_kernel(%arg0: i32, %arg1: memref<16x128xf32, #tpu.memory_space<vmem>>, %arg2: memref<1x128xf32, #tpu.memory_space<vmem>>, %arg3: memref<1x128xf32, #tpu.memory_space<vmem>>, %arg4: memref<16x128xf32, #tpu.memory_space<vmem>>) attributes {dimension_semantics = [#tpu.dimension_semantics<parallel>], iteration_bounds = array<i64: 1>, scalar_prefetch = 0 : i64, scratch_operands = 0 : i64, tpu.core_type = #tpu.core_type<tc>, window_params = [{transform_indices = @transform_0, window_bounds = array<i64: 16, 128>}, {transform_indices = @transform_1, window_bounds = array<i64: 1, 128>}, {transform_indices = @transform_2, window_bounds = array<i64: 1, 128>}, {transform_indices = @transform_3, window_bounds = array<i64: 16, 128>}]} {
    %c0 = arith.constant 0 : index
    %c0_0 = arith.constant 0 : index
    %0 = vector.load %arg1[%c0, %c0_0] : memref<16x128xf32, #tpu.memory_space<vmem>>, vector<16x128xf32>
    %cst = arith.constant dense<0.000000e+00> : vector<128xf32>
    %1 = vector.multi_reduction <add>, %0, %cst [0] : vector<16x128xf32> to vector<128xf32>
    %2 = vector.shape_cast %1 : vector<128xf32> to vector<1x128xf32>
    %3 = arith.mulf %0, %0 : vector<16x128xf32>
    %cst_1 = arith.constant dense<0.000000e+00> : vector<128xf32>
    %4 = vector.multi_reduction <add>, %3, %cst_1 [0] : vector<16x128xf32> to vector<128xf32>
    %5 = vector.shape_cast %4 : vector<128xf32> to vector<1x128xf32>
    %cst_2 = arith.constant 6.250000e-02 : f32
    %6 = vector.broadcast %cst_2 : f32 to vector<1x128xf32>
    %7 = arith.mulf %2, %6 : vector<1x128xf32>
    %cst_3 = arith.constant 6.250000e-02 : f32
    %8 = vector.broadcast %cst_3 : f32 to vector<1x128xf32>
    %9 = arith.mulf %5, %8 : vector<1x128xf32>
    %10 = arith.mulf %7, %7 : vector<1x128xf32>
    %11 = arith.subf %9, %10 : vector<1x128xf32>
    %cst_4 = arith.constant 0.000000e+00 : f32
    %12 = vector.broadcast %cst_4 : f32 to vector<1x128xf32>
    %13 = arith.maximumf %11, %12 : vector<1x128xf32>
    %cst_5 = arith.constant 9.99999974E-6 : f32
    %14 = vector.broadcast %cst_5 : f32 to vector<1x128xf32>
    %15 = arith.addf %13, %14 : vector<1x128xf32>
    %16 = math.rsqrt %15 : vector<1x128xf32>
    %c0_6 = arith.constant 0 : index
    %c0_7 = arith.constant 0 : index
    %17 = vector.load %arg2[%c0_6, %c0_7] : memref<1x128xf32, #tpu.memory_space<vmem>>, vector<1x128xf32>
    %18 = arith.mulf %17, %16 : vector<1x128xf32>
    %c0_8 = arith.constant 0 : index
    %c0_9 = arith.constant 0 : index
    %19 = vector.load %arg3[%c0_8, %c0_9] : memref<1x128xf32, #tpu.memory_space<vmem>>, vector<1x128xf32>
    %20 = arith.mulf %7, %18 : vector<1x128xf32>
    %21 = arith.subf %19, %20 : vector<1x128xf32>
    %22 = vector.broadcast %18 : vector<1x128xf32> to vector<16x128xf32>
    %23 = arith.mulf %0, %22 : vector<16x128xf32>
    %24 = vector.broadcast %21 : vector<1x128xf32> to vector<16x128xf32>
    %25 = arith.addf %23, %24 : vector<16x128xf32>
    %c0_10 = arith.constant 0 : index
    %c0_11 = arith.constant 0 : index
    %26 = vector.load %arg4[%c0_10, %c0_11] : memref<16x128xf32, #tpu.memory_space<vmem>>, vector<16x128xf32>
    tpu.vector_store %arg4[%c0_10, %c0_11], %25 {strides = array<i32>} : memref<16x128xf32, #tpu.memory_space<vmem>>, vector<16x128xf32>,
    return
  }
  func.func @transform_0(%arg0: i32) -> (i32, i32) {
    %c0_i32 = arith.constant 0 : i32
    %c0_i32_0 = arith.constant 0 : i32
    return %c0_i32, %arg0 : i32, i32
  }
  func.func @transform_1(%arg0: i32) -> (i32, i32) {
    %c0_i32 = arith.constant 0 : i32
    %c0_i32_0 = arith.constant 0 : i32
    return %c0_i32, %arg0 : i32, i32
  }
  func.func @transform_2(%arg0: i32) -> (i32, i32) {
    %c0_i32 = arith.constant 0 : i32
    %c0_i32_0 = arith.constant 0 : i32
    return %c0_i32, %arg0 : i32, i32
  }
  func.func @transform_3(%arg0: i32) -> (i32, i32) {
    %c0_i32 = arith.constant 0 : i32
    %c0_i32_0 = arith.constant 0 : i32
    return %c0_i32, %arg0 : i32, i32
  }
}

</mosaic_0001>

<llo_original>
// kernel: tpu_custom_call.1
$region0: #{tpu_custom_call.1}
  #allocation0 [shape = 'u32[]', space=smem, size = 0x4, offset = 0x4, fixed_abs, tag = 'smem constant byte address 0x4 - core index']
  #allocation1 [shape = 'u32[144,128]{1,0:T(1,128)}', space=vmem, size = 0x12000, scoped, tag = 'internal scratch']
  %s0 = inlined_call_operand.hbm [shape: f32[16,128], index: 0, kind: input, shape index: {}]
  %s1 = inlined_call_operand.vmem [shape: f32[1,128], index: 1, kind: input, shape index: {}]
  %s2 = inlined_call_operand.vmem [shape: f32[1,128], index: 2, kind: input, shape index: {}]
  %s3 = inlined_call_operand.hbm [shape: f32[16,128], index: 3, kind: output, shape index: {}]
  %s4 = sld [smem:[#allocation0]]
  $region26: #{tpu_custom_call.1} parent=0
    _
  %s6 = ssub.s32 1, %s4
  %s7 = scalar_select 0, %s6, %s4
  $region1: #{tpu_custom_call.1} parent=0
    #allocation2 [shape = 'u8[8192]{0}', space=vmem, size = 0x2000, scoped, tag = 'input window, operand 0, single buffered']
    #allocation3 [shape = 's32[1]{0}', space=sflag, size = 0x4, scoped, tag = 'scoped memory for tpu_custom_call.1']
    #allocation4 [shape = 's32[1]{0}', space=sflag, size = 0x4, scoped, tag = 'scoped memory for tpu_custom_call.1']
    #allocation5 [shape = 'u8[8192]{0}', space=vmem, size = 0x2000, scoped, tag = 'output window, operand 0, single buffered']
    %8 = vsyncpa [#allocation3], 0
    %9 = vsyncpa [#allocation4], 0
    // Predicated region
    $region2: #{tpu_custom_call.1} parent=1 // pred_check
      _
    $region3: #{tpu_custom_call.1} parent=1 // pred_check_branch
      %11 = sbr.rel (0) target = $region5
    $region4: #{tpu_custom_call.1} parent=1 // pred_region
      %s13 = ssub.s32 256, 256
      %14 = vsyncadd [#allocation3], %s13
      %s15 = sshll.u32 [#allocation2], 4
      %s16 = int_to_ptr.vmem [resolvable:$true] %s15
      %21 = dma.hbm_to_vmem [thread:$0]  %s0, 256, %s16, [#allocation3], 128, 128, 8
    $region5: #{tpu_custom_call.1} parent=1 // pred_fallthru
      _
    // Predicated region
    $region6: #{tpu_custom_call.1} parent=1 // pred_check
      _
    $region7: #{tpu_custom_call.1} parent=1 // pred_check_branch
      %23 = sbr.rel (0) target = $region9
    $region8: #{tpu_custom_call.1} parent=1 // pred_region
      _
    $region9: #{tpu_custom_call.1} parent=1 // pred_fallthru
      _
    // Predicated region
    $region10: #{tpu_custom_call.1} parent=1 // pred_check
      _
    $region11: #{tpu_custom_call.1} parent=1 // pred_check_branch
      %25 = sbr.rel (0) target = $region13
    $region12: #{tpu_custom_call.1} parent=1 // pred_region
      _
    $region13: #{tpu_custom_call.1} parent=1 // pred_fallthru
      _
    // Predicated region
    $region14: #{tpu_custom_call.1} parent=1 // pred_check
      _
    $region15: #{tpu_custom_call.1} parent=1 // pred_check_branch
      %27 = sbr.rel (0) target = $region17
    $region16: #{tpu_custom_call.1} parent=1 // pred_region
      %28 = dma.done [#allocation3], 256
    $region17: #{tpu_custom_call.1} parent=1 // pred_fallthru
      _
    %v29 = vld [vmem:[#allocation2] sm:$0xff]
    %v30 = vld [vmem:[#allocation2 + $0x8] sm:$0xff]
    %v31 = vadd.f32 %v29, %v30
    %v32 = vrot.slane %v31, 4
    %v33 = vadd.f32 %v31, %v32
    %v34 = vrot.slane %v33, 2
    %v35 = vadd.f32 %v33, %v34
    %v36 = vrot.slane %v35, 1
    %v37 = vadd.f32 %v35, %v36
    %v38 = vmul.f32 %v29, %v29
    %v39 = vmul.f32 %v30, %v30
    %v40 = vadd.f32 %v38, %v39
    %v41 = vrot.slane %v40, 4
    %v42 = vadd.f32 %v40, %v41
    %v43 = vrot.slane %v42, 2
    %v44 = vadd.f32 %v42, %v43
    %v45 = vrot.slane %v44, 1
    %v46 = vadd.f32 %v44, %v45
    %v47 = vmul.f32 %v37, 0.0625
    %v48 = vmul.f32 %v46, 0.0625
    %v49 = vmul.f32 %v47, %v47
    %v50 = vsub.f32 %v48, %v49
    %v51 = vmax.f32 %v50, 0.0
    %v52 = vadd.f32 %v51, 1e-05
    %v53 = vrsqrt.pop %v52
    %v54 = vld [vmem:[%s1] sm:$0x1]
    %v55 = vmul.f32 %v54, %v53
    %v56 = vld [vmem:[%s2] sm:$0x1]
    %v57 = vmul.f32 %v47, %v55
    %v58 = vsub.f32 %v56, %v57
    %v60 = vlaneseq
    %v61 = vshrl.u32 %v60, 7
    %v62 = vsub.s32 0, %v61
    %v63 = vrot.slane %v55, %v62
    %v65 = vmul.f32 %v29, %v63
    %v66 = vmul.f32 %v30, %v63
    %v68 = vlaneseq
    %v69 = vshrl.u32 %v68, 7
    %v70 = vsub.s32 0, %v69
    %v71 = vrot.slane %v58, %v70
    %v73 = vadd.f32 %v65, %v71
    %v74 = vadd.f32 %v66, %v71
    %75 = vst [vmem:[#allocation5] sm:$0xff] %v73
    %76 = vst [vmem:[#allocation5 + $0x8] sm:$0xff] %v74
    // Predicated region
    $region18: #{tpu_custom_call.1} parent=1 // pred_check
      _
    $region19: #{tpu_custom_call.1} parent=1 // pred_check_branch
      %78 = sbr.rel (0) target = $region21
    $region20: #{tpu_custom_call.1} parent=1 // pred_region
      %s80 = ssub.s32 256, 256
      %81 = vsyncadd [#allocation4], %s80
      %s82 = sshll.u32 [#allocation5], 4
      %s83 = int_to_ptr.vmem [resolvable:$true] %s82
      %88 = dma.vmem_to_hbm [thread:$0]  %s83, 256, %s3, [#allocation4], 128, 128, 8
    $region21: #{tpu_custom_call.1} parent=1 // pred_fallthru
      _
    // Predicated region
    $region22: #{tpu_custom_call.1} parent=1 // pred_check
      _
    $region23: #{tpu_custom_call.1} parent=1 // pred_check_branch
      %90 = sbr.rel (0) target = $region25
    $region24: #{tpu_custom_call.1} parent=1 // pred_region
      %91 = dma.done [#allocation4], 256
    $region25: #{tpu_custom_call.1} parent=1 // pred_fallthru
      _
    %92 = vsyncpa [#allocation3], 1
    %93 = vsyncpa [#allocation4], 1

</llo_original>
